<compile_context>
chip_gen: v7x
topology: tpu7x:2x2x1
jax: 0.10.0
libtpu: 0.0.40
codegen_flags: <defaults>
</compile_context>

<pallas_src>
import math

import jax
import jax.numpy as jnp
from jax.experimental import pallas as pl
from jax.experimental.pallas import tpu as pltpu


def primary_capsule_kernel(x_ref, w_ref, gt_ref, p_ref, g_ref, pt_ref, o_ref):
    """One grid step = one lane tile (a group of whole batch elements).

    x_ref  : (K,  LT)  fused input: rows = C*in_units + ones row, cols = batch*node
    w_ref  : (UD, K)   flattened conv weights of all units, bias folded as last column
    gt_ref : (U,  UD)  unit-membership indicator (transposed)   -> cap_dim-row reduce
    p_ref  : (LT, Gl)  node-group membership indicator          -> node-lane reduce
    g_ref  : (UD, U)   unit-membership indicator                -> row broadcast
    pt_ref : (Gl, LT)  node-group membership indicator (transp) -> lane broadcast
    o_ref  : (UD, LT)  squashed primary capsule activations (pre logical reshape)
    """
    # Conv over all units and all batch elements in this tile == one MXU matmul
    # (bias rides along through the ones row / bias column).
    r = jnp.dot(w_ref[...], x_ref[...], preferred_element_type=jnp.float32)        # (UD, LT)
    rsq = r * r

    # Per-capsule |s|^2 via low-rank indicator matmuls: reduce rows within a unit,
    # then lanes within a batch element -> tiny (UD, Gl) tensor.
    t1 = jnp.dot(gt_ref[...], rsq, preferred_element_type=jnp.float32)             # (U,  LT)
    t2 = jnp.dot(t1, p_ref[...], preferred_element_type=jnp.float32)               # (U,  Gl)
    mag_sq = jnp.dot(g_ref[...], t2, preferred_element_type=jnp.float32)           # (UD, Gl)

    # squash:  mag_sq/(1+mag_sq) * s/|s|  ==  s * |s| / (1 + mag_sq)
    # Computed on the small (UD, Gl) tensor, then broadcast back on the MXU.
    scale_small = jnp.sqrt(mag_sq + 1e-12) / (1.0 + mag_sq)                        # (UD, Gl)
    scale = jnp.dot(scale_small, pt_ref[...], preferred_element_type=jnp.float32)  # (UD, LT)

    o_ref[...] = (r * scale).astype(o_ref.dtype)


def _choose_batch_tile(n, w, target_lanes=2048):
    """Pick (batch elements per grid step, padded batch).

    A tile always contains whole batch elements (the squash reduction is per batch
    element).  Its lane width tb*w is either a multiple of 128 (full vregs, unmasked
    stores, >=1 parallel steps for megacore) or — for small problems — the whole
    padded array (block == full array dims, always legal).
    """
    m0 = 128 // math.gcd(w, 128)          # smallest tb with (tb * w) % 128 == 0
    if n < m0:
        return n, n                       # small problem: single full-array tile
    tb = m0 * max(1, min(target_lanes // (m0 * w), n // m0))
    n_pad = -(-n // tb) * tb
    return tb, n_pad


def primary_capsule_forward(x, weight, bias, *, num_units, cap_dim):
    """x: (N, C, H, W) with H == in_units; weight: (U, D, C, H); bias: (U, D)."""
    N, C, H, W = x.shape
    U, D = num_units, cap_dim
    CH = C * H
    UD = U * D
    K = CH + 1                             # +1 ones row: bias folded into the matmul

    tb, n_pad = _choose_batch_tile(N, W)
    LT = tb * W                            # lanes per grid step
    Gl = tb                                # node groups (batch elements) per tile
    num_tiles = n_pad // tb

    # (N,C,H,W) -> (C,H,N,W) -> (CH, N*W): fuse batch into the lane axis so one matmul
    # covers every batch element; pad batch to a whole number of tiles (sliced off later;
    # padded columns only see the bias and never contaminate real capsules).
    x2d = jnp.transpose(x, (1, 2, 0, 3)).reshape(CH, N * W)
    if n_pad != N:
        x2d = jnp.pad(x2d, ((0, 0), (0, (n_pad - N) * W)))
    x_aug = jnp.concatenate([x2d, jnp.ones((1, n_pad * W), x2d.dtype)], axis=0)   # (K, npad*W)

    # w_aug[u*D+d, c*H+h] = weight[u,d,c,h]; last column = bias[u,d]
    w_aug = jnp.concatenate(
        [weight.reshape(UD, CH), bias.reshape(UD, 1)], axis=1
    ).astype(x.dtype)                                                              # (UD, K)

    # Low-rank indicator matrices for the per-capsule reduce/broadcast on the MXU.
    row_grp = jnp.arange(UD) // D
    g_mat = (row_grp[:, None] == jnp.arange(U)[None, :]).astype(jnp.float32)       # (UD, U)
    gt_mat = g_mat.T                                                               # (U,  UD)
    lane_grp = jnp.arange(LT) // W
    p_mat = (lane_grp[:, None] == jnp.arange(Gl)[None, :]).astype(jnp.float32)     # (LT, Gl)
    pt_mat = p_mat.T                                                               # (Gl, LT)

    out2d = pl.pallas_call(
        primary_capsule_kernel,
        out_shape=jax.ShapeDtypeStruct((UD, n_pad * W), x.dtype),
        grid=(num_tiles,),
        in_specs=[
            pl.BlockSpec((K, LT), lambda i: (0, i)),      # input tile (fused batch*node)
            pl.BlockSpec((UD, K), lambda i: (0, 0)),      # weights: resident, no re-DMA
            pl.BlockSpec((U, UD), lambda i: (0, 0)),      # tiny indicators: resident
            pl.BlockSpec((LT, Gl), lambda i: (0, 0)),
            pl.BlockSpec((UD, U), lambda i: (0, 0)),
            pl.BlockSpec((Gl, LT), lambda i: (0, 0)),
        ],
        out_specs=pl.BlockSpec((UD, LT), lambda i: (0, i)),
        compiler_params=pltpu.CompilerParams(
            dimension_semantics=("parallel",)),
    )(x_aug, w_aug, gt_mat, p_mat, g_mat, pt_mat)

    # (UD, N*W) -> (N, U, D*W): contiguous reshape/transpose outside the kernel
    # (layout plumbing in XLA, matches torch's stack(dim=1) + .view(N, U, -1) ordering).
    out2d = out2d[:, : N * W]
    out = out2d.reshape(U, D, N, W)
    out = jnp.transpose(out, (2, 0, 1, 3)).reshape(N, U, D * W)
    return out


def primary_capsule_reference(x, weight, bias):
    """Pure-JAX reference mirroring the PyTorch forward exactly."""
    u = jnp.einsum("nchw,udch->nudw", x, weight) + bias[None, :, :, None]
    u = u.reshape(x.shape[0], weight.shape[0], -1)
    mag_sq = jnp.sum(u ** 2, axis=2, keepdims=True)
    mag = jnp.sqrt(mag_sq)
    return mag_sq / (1.0 + mag_sq) * (u / mag)


if __name__ == "__main__":
    # Module hyper-parameters (small, consistent with the forward pass).
    in_units = 3          # H (GCN layers) — conv kernel spans the whole axis
    in_channels = 4       # C
    num_units = 8         # number of primary capsules
    capsule_dimensions = 8
    batch = 2
    num_nodes = 16        # W

    key = jax.random.PRNGKey(0)
    kx, kw, kb = jax.random.split(key, 3)

    # Input: NCHW = (batch, in_channels, in_units, num_nodes)
    x = jax.random.normal(kx, (batch, in_channels, in_units, num_nodes), jnp.float32)

    # Parameter shapes from torch.nn.Conv1d(in_channels, capsule_dimensions,
    # kernel_size=(in_units, 1)) replicated num_units times.
    weight = 0.1 * jax.random.normal(
        kw, (num_units, capsule_dimensions, in_channels, in_units), jnp.float32
    )
    bias = 0.01 * jax.random.normal(kb, (num_units, capsule_dimensions), jnp.float32)

    out = primary_capsule_forward(
        x, weight, bias, num_units=num_units, cap_dim=capsule_dimensions
    )
    out = jax.block_until_ready(out)

    ref = primary_capsule_reference(x, weight, bias)
    assert out.shape == (batch, num_units, capsule_dimensions * num_nodes)
    assert jnp.allclose(out, ref, atol=1e-5, rtol=1e-5)

    print("KERNEL_OK")
</pallas_src>

<mosaic_0001>
module attributes {stable_mosaic.version = 11 : i64} {
  func.func @primary_capsule_kernel(%arg0: i32, %arg1: memref<13x32xf32, #tpu.memory_space<vmem>>, %arg2: memref<64x13xf32, #tpu.memory_space<vmem>>, %arg3: memref<8x64xf32, #tpu.memory_space<vmem>>, %arg4: memref<32x2xf32, #tpu.memory_space<vmem>>, %arg5: memref<64x8xf32, #tpu.memory_space<vmem>>, %arg6: memref<2x32xf32, #tpu.memory_space<vmem>>, %arg7: memref<64x32xf32, #tpu.memory_space<vmem>>) attributes {dimension_semantics = [#tpu.dimension_semantics<parallel>], iteration_bounds = array<i64: 1>, scalar_prefetch = 0 : i64, scratch_operands = 0 : i64, tpu.core_type = #tpu.core_type<tc>, window_params = [{transform_indices = @transform_0, window_bounds = array<i64: 13, 32>}, {pipeline_mode = #tpu.pipeline_mode<synchronous>, transform_indices = @transform_1, window_bounds = array<i64: 64, 13>}, {pipeline_mode = #tpu.pipeline_mode<synchronous>, transform_indices = @transform_2, window_bounds = array<i64: 8, 64>}, {pipeline_mode = #tpu.pipeline_mode<synchronous>, transform_indices = @transform_3, window_bounds = array<i64: 32, 2>}, {pipeline_mode = #tpu.pipeline_mode<synchronous>, transform_indices = @transform_4, window_bounds = array<i64: 64, 8>}, {pipeline_mode = #tpu.pipeline_mode<synchronous>, transform_indices = @transform_5, window_bounds = array<i64: 2, 32>}, {transform_indices = @transform_6, window_bounds = array<i64: 64, 32>}]} {
    %c0 = arith.constant 0 : index
    %c0_0 = arith.constant 0 : index
    %0 = vector.load %arg2[%c0, %c0_0] : memref<64x13xf32, #tpu.memory_space<vmem>>, vector<64x13xf32>
    %c0_1 = arith.constant 0 : index
    %c0_2 = arith.constant 0 : index
    %1 = vector.load %arg1[%c0_1, %c0_2] : memref<13x32xf32, #tpu.memory_space<vmem>>, vector<13x32xf32>
    %cst = arith.constant dense<0.000000e+00> : vector<64x32xf32>
    %2 = tpu.matmul %0, %1, %cst {dimension_numbers = #tpu.dot_dimension_numbers<[1], [0], [0], [1], [0, 0, 1, 1], [], []>} : vector<64x13xf32>, vector<13x32xf32>, vector<64x32xf32> -> vector<64x32xf32>
    %3 = arith.mulf %2, %2 : vector<64x32xf32>
    %c0_3 = arith.constant 0 : index
    %c0_4 = arith.constant 0 : index
    %4 = vector.load %arg3[%c0_3, %c0_4] : memref<8x64xf32, #tpu.memory_space<vmem>>, vector<8x64xf32>
    %cst_5 = arith.constant dense<0.000000e+00> : vector<8x32xf32>
    %5 = tpu.matmul %4, %3, %cst_5 {dimension_numbers = #tpu.dot_dimension_numbers<[1], [0], [0], [1], [0, 0, 1, 1], [], []>} : vector<8x64xf32>, vector<64x32xf32>, vector<8x32xf32> -> vector<8x32xf32>
    %c0_6 = arith.constant 0 : index
    %c0_7 = arith.constant 0 : index
    %6 = vector.load %arg4[%c0_6, %c0_7] : memref<32x2xf32, #tpu.memory_space<vmem>>, vector<32x2xf32>
    %cst_8 = arith.constant dense<0.000000e+00> : vector<8x2xf32>
    %7 = tpu.matmul %5, %6, %cst_8 {dimension_numbers = #tpu.dot_dimension_numbers<[1], [0], [0], [1], [0, 0, 1, 1], [], []>} : vector<8x32xf32>, vector<32x2xf32>, vector<8x2xf32> -> vector<8x2xf32>
    %c0_9 = arith.constant 0 : index
    %c0_10 = arith.constant 0 : index
    %8 = vector.load %arg5[%c0_9, %c0_10] : memref<64x8xf32, #tpu.memory_space<vmem>>, vector<64x8xf32>
    %cst_11 = arith.constant dense<0.000000e+00> : vector<64x2xf32>
    %9 = tpu.matmul %8, %7, %cst_11 {dimension_numbers = #tpu.dot_dimension_numbers<[1], [0], [0], [1], [0, 0, 1, 1], [], []>} : vector<64x8xf32>, vector<8x2xf32>, vector<64x2xf32> -> vector<64x2xf32>
    %cst_12 = arith.constant 9.99999996E-13 : f32
    %10 = vector.broadcast %cst_12 : f32 to vector<64x2xf32>
    %11 = arith.addf %9, %10 : vector<64x2xf32>
    %12 = math.sqrt %11 : vector<64x2xf32>
    %cst_13 = arith.constant 1.000000e+00 : f32
    %13 = vector.broadcast %cst_13 : f32 to vector<64x2xf32>
    %14 = arith.addf %13, %9 : vector<64x2xf32>
    %15 = arith.divf %12, %14 : vector<64x2xf32>
    %c0_14 = arith.constant 0 : index
    %c0_15 = arith.constant 0 : index
    %16 = vector.load %arg6[%c0_14, %c0_15] : memref<2x32xf32, #tpu.memory_space<vmem>>, vector<2x32xf32>
    %cst_16 = arith.constant dense<0.000000e+00> : vector<64x32xf32>
    %17 = tpu.matmul %15, %16, %cst_16 {dimension_numbers = #tpu.dot_dimension_numbers<[1], [0], [0], [1], [0, 0, 1, 1], [], []>} : vector<64x2xf32>, vector<2x32xf32>, vector<64x32xf32> -> vector<64x32xf32>
    %18 = arith.mulf %2, %17 : vector<64x32xf32>
    %c0_17 = arith.constant 0 : index
    %c0_18 = arith.constant 0 : index
    %19 = vector.load %arg7[%c0_17, %c0_18] : memref<64x32xf32, #tpu.memory_space<vmem>>, vector<64x32xf32>
    tpu.vector_store %arg7[%c0_17, %c0_18], %18 {strides = array<i32>} : memref<64x32xf32, #tpu.memory_space<vmem>>, vector<64x32xf32>,
    return
  }
  func.func @transform_0(%arg0: i32) -> (i32, i32) {
    %c0_i32 = arith.constant 0 : i32
    %c0_i32_0 = arith.constant 0 : i32
    return %c0_i32, %arg0 : i32, i32
  }
  func.func @transform_1(%arg0: i32) -> (i32, i32) {
    %c0_i32 = arith.constant 0 : i32
    %c0_i32_0 = arith.constant 0 : i32
    %c0_i32_1 = arith.constant 0 : i32
    return %c0_i32, %c0_i32_0 : i32, i32
  }
  func.func @transform_2(%arg0: i32) -> (i32, i32) {
    %c0_i32 = arith.constant 0 : i32
    %c0_i32_0 = arith.constant 0 : i32
    %c0_i32_1 = arith.constant 0 : i32
    return %c0_i32, %c0_i32_0 : i32, i32
  }
  func.func @transform_3(%arg0: i32) -> (i32, i32) {
    %c0_i32 = arith.constant 0 : i32
    %c0_i32_0 = arith.constant 0 : i32
    %c0_i32_1 = arith.constant 0 : i32
    return %c0_i32, %c0_i32_0 : i32, i32
  }
  func.func @transform_4(%arg0: i32) -> (i32, i32) {
    %c0_i32 = arith.constant 0 : i32
    %c0_i32_0 = arith.constant 0 : i32
    %c0_i32_1 = arith.constant 0 : i32
    return %c0_i32, %c0_i32_0 : i32, i32
  }
  func.func @transform_5(%arg0: i32) -> (i32, i32) {
    %c0_i32 = arith.constant 0 : i32
    %c0_i32_0 = arith.constant 0 : i32
    %c0_i32_1 = arith.constant 0 : i32
    return %c0_i32, %c0_i32_0 : i32, i32
  }
  func.func @transform_6(%arg0: i32) -> (i32, i32) {
    %c0_i32 = arith.constant 0 : i32
    %c0_i32_0 = arith.constant 0 : i32
    return %c0_i32, %arg0 : i32, i32
  }
}

</mosaic_0001>

<llo_original>
// kernel: tpu_custom_call.1
$region0: #{tpu_custom_call.1}
  #allocation0 [shape = 'u32[]', space=smem, size = 0x4, offset = 0x4, fixed_abs, tag = 'smem constant byte address 0x4 - core index']
  #allocation1 [shape = 'u32[144,128]{1,0:T(1,128)}', space=vmem, size = 0x12000, scoped, tag = 'internal scratch']
  %s0 = inlined_call_operand.vmem [shape: f32[13,32], index: 0, kind: input, shape index: {}]
  %s1 = inlined_call_operand.vmem [shape: f32[64,13], index: 1, kind: input, shape index: {}]
  %s2 = inlined_call_operand.vmem [shape: f32[8,64], index: 2, kind: input, shape index: {}]
  %s3 = inlined_call_operand.vmem [shape: f32[32,2], index: 3, kind: input, shape index: {}]
  %s4 = inlined_call_operand.vmem [shape: f32[64,8], index: 4, kind: input, shape index: {}]
  %s5 = inlined_call_operand.vmem [shape: f32[2,32], index: 5, kind: input, shape index: {}]
  %s6 = inlined_call_operand.vmem [shape: f32[64,32], index: 6, kind: output, shape index: {}]
  %s7 = sld [smem:[#allocation0]]
  $region34: #{tpu_custom_call.1} parent=0
    _
  %s9 = ssub.s32 1, %s7
  %s10 = scalar_select 0, %s9, %s7
  // Predicated region
  $region2: #{tpu_custom_call.1} parent=0 // pred_check
    _
  $region3: #{tpu_custom_call.1} parent=0 // pred_check_branch
    %12 = sbr.rel (0) target = $region5
  $region4: #{tpu_custom_call.1} parent=0 // pred_region
    _
  $region5: #{tpu_custom_call.1} parent=0 // pred_fallthru
    _
  // Predicated region
  $region6: #{tpu_custom_call.1} parent=0 // pred_check
    _
  $region7: #{tpu_custom_call.1} parent=0 // pred_check_branch
    %14 = sbr.rel (0) target = $region9
  $region8: #{tpu_custom_call.1} parent=0 // pred_region
    _
  $region9: #{tpu_custom_call.1} parent=0 // pred_fallthru
    _
  // Predicated region
  $region10: #{tpu_custom_call.1} parent=0 // pred_check
    _
  $region11: #{tpu_custom_call.1} parent=0 // pred_check_branch
    %16 = sbr.rel (0) target = $region13
  $region12: #{tpu_custom_call.1} parent=0 // pred_region
    _
  $region13: #{tpu_custom_call.1} parent=0 // pred_fallthru
    _
  // Predicated region
  $region14: #{tpu_custom_call.1} parent=0 // pred_check
    _
  $region15: #{tpu_custom_call.1} parent=0 // pred_check_branch
    %18 = sbr.rel (0) target = $region17
  $region16: #{tpu_custom_call.1} parent=0 // pred_region
    _
  $region17: #{tpu_custom_call.1} parent=0 // pred_fallthru
    _
  // Predicated region
  $region18: #{tpu_custom_call.1} parent=0 // pred_check
    _
  $region19: #{tpu_custom_call.1} parent=0 // pred_check_branch
    %20 = sbr.rel (0) target = $region21
  $region20: #{tpu_custom_call.1} parent=0 // pred_region
    _
  $region21: #{tpu_custom_call.1} parent=0 // pred_fallthru
    _
  // Predicated region
  $region22: #{tpu_custom_call.1} parent=0 // pred_check
    _
  $region23: #{tpu_custom_call.1} parent=0 // pred_check_branch
    %22 = sbr.rel (0) target = $region25
  $region24: #{tpu_custom_call.1} parent=0 // pred_region
    _
  $region25: #{tpu_custom_call.1} parent=0 // pred_fallthru
    _
  %v23 = vld [vmem:[%s1] sm:$0xff]
  %v24 = vld [vmem:[%s1 + $0x8] sm:$0xff]
  %v25 = vld [vmem:[%s1 + $0x10] sm:$0xff]
  %v26 = vld [vmem:[%s1 + $0x18] sm:$0xff]
  %v27 = vld [vmem:[%s1 + $0x20] sm:$0xff]
  %v28 = vld [vmem:[%s1 + $0x28] sm:$0xff]
  %v29 = vld [vmem:[%s1 + $0x30] sm:$0xff]
  %v30 = vld [vmem:[%s1 + $0x38] sm:$0xff]
  %v31 = vld [vmem:[%s0] sm:$0xff]
  %v32 = vld [vmem:[%s0 + $0x8] sm:$0x1f]
  %vm33 = vcmask 105472
  %v35 = vsel %vm33, %v23, 0
  %v38 = vsel %vm33, %v24, 0
  %v41 = vsel %vm33, %v25, 0
  %v44 = vsel %vm33, %v26, 0
  %v47 = vsel %vm33, %v27, 0
  %v50 = vsel %vm33, %v28, 0
  %v53 = vsel %vm33, %v29, 0
  %v56 = vsel %vm33, %v30, 0
  %vm58 = vcmask 1044480
  %v60 = vsel %vm58, %v32, 0
  %62 = vmatprep.subr.mxu0 0.0
  %63 = vmatpush1.msra.mxu0 %v31
  %64 = vmatprep.subr.mxu0 0.0
  %65 = vmatpush1.msra.mxu0 %v60
  %66 = vmatprep.subr.mxu0 0.0
  %67 = vmatpush1.msra.mxu0 0.0
  %68 = vmatprep.subr.mxu0 0.0
  %69 = vmatpush1.msra.mxu0 0.0
  %70 = vmatprep.subr.mxu0 0.0
  %71 = vmatpush1.msra.mxu0 0.0
  %72 = vmatprep.subr.mxu0 0.0
  %73 = vmatpush1.msra.mxu0 0.0
  %74 = vmatprep.subr.mxu0 0.0
  %75 = vmatpush1.msra.mxu0 0.0
  %76 = vmatprep.subr.mxu0 0.0
  %77 = vmatpush1.msra.mxu0 0.0
  %78 = vmatprep.subr.mxu0 0.0
  %79 = vmatpush1.msra.mxu0 0.0
  %80 = vmatprep.subr.mxu0 0.0
  %81 = vmatpush1.msra.mxu0 0.0
  %82 = vmatprep.subr.mxu0 0.0
  %83 = vmatpush1.msra.mxu0 0.0
  %84 = vmatprep.subr.mxu0 0.0
  %85 = vmatpush1.msra.mxu0 0.0
  %86 = vmatprep.subr.mxu0 0.0
  %87 = vmatpush1.msra.mxu0 0.0
  %88 = vmatprep.subr.mxu0 0.0
  %89 = vmatpush1.msra.mxu0 0.0
  %90 = vmatprep.subr.mxu0 0.0
  %91 = vmatpush1.msra.mxu0 0.0
  %92 = vmatprep.subr.mxu0 0.0
  %93 = vmatpush1.msra.mxu0 0.0
  %94 = vmatprep.subr.mxu0 0.0
  %95 = vmatpush1.msra.mxu0 0.0
  %96 = vmatprep.subr.mxu0 0.0
  %97 = vmatpush1.msra.mxu0 0.0
  %98 = vmatprep.subr.mxu0 0.0
  %99 = vmatpush1.msra.mxu0 0.0
  %100 = vmatprep.subr.mxu0 0.0
  %101 = vmatpush1.msra.mxu0 0.0
  %102 = vmatprep.subr.mxu0 0.0
  %103 = vmatpush1.msra.mxu0 0.0
  %104 = vmatprep.subr.mxu0 0.0
  %105 = vmatpush1.msra.mxu0 0.0
  %106 = vmatprep.subr.mxu0 0.0
  %107 = vmatpush1.msra.mxu0 0.0
  %108 = vmatprep.subr.mxu0 0.0
  %109 = vmatpush1.msra.mxu0 0.0
  %110 = vmatprep.subr.mxu0 0.0
  %111 = vmatpush1.msra.mxu0 0.0
  %112 = vmatprep.subr.mxu0 0.0
  %113 = vmatpush1.msra.mxu0 0.0
  %114 = vmatprep.subr.mxu0 0.0
  %115 = vmatpush1.msra.mxu0 0.0
  %116 = vmatprep.subr.mxu0 0.0
  %117 = vmatpush1.msra.mxu0 0.0
  %118 = vmatprep.subr.mxu0 0.0
  %119 = vmatpush1.msra.mxu0 0.0
  %120 = vmatprep.subr.mxu0 0.0
  %121 = vmatpush1.msra.mxu0 0.0
  %122 = vmatprep.subr.mxu0 0.0
  %123 = vmatpush1.msra.mxu0 0.0
  %124 = vmatprep.subr.mxu0 0.0
  %125 = vmatpush1.msra.mxu0 0.0
  %126 = vmatprep.mubr.f32.mxu0 0.0
  %127 = vmatmul.mubr.f32.gmra.mrb[0].mxu0 %v35
  %v128 = vpop.f32.mrb[0].mxu0
  %v129 = vadd.f32 0.0, %v128
  %v130 = vpop.f32.mrb[0].mxu0
  %131 = vmatprep.mubr.f32.mxu0 0.0
  %132 = vmatmul.mubr.f32.gmra.mrb[0].mxu0 %v38
  %v133 = vpop.f32.mrb[0].mxu0
  %v134 = vadd.f32 0.0, %v133
  %v135 = vpop.f32.mrb[0].mxu0
  %136 = vmatprep.mubr.f32.mxu0 0.0
  %137 = vmatmul.mubr.f32.gmra.mrb[0].mxu0 %v41
  %v138 = vpop.f32.mrb[0].mxu0
  %v139 = vadd.f32 0.0, %v138
  %v140 = vpop.f32.mrb[0].mxu0
  %141 = vmatprep.mubr.f32.mxu0 0.0
  %142 = vmatmul.mubr.f32.gmra.mrb[0].mxu0 %v44
  %v143 = vpop.f32.mrb[0].mxu0
  %v144 = vadd.f32 0.0, %v143
  %v145 = vpop.f32.mrb[0].mxu0
  %146 = vmatprep.mubr.f32.mxu0 0.0
  %147 = vmatmul.mubr.f32.gmra.mrb[0].mxu0 %v47
  %v148 = vpop.f32.mrb[0].mxu0
  %v149 = vadd.f32 0.0, %v148
  %v150 = vpop.f32.mrb[0].mxu0
  %151 = vmatprep.mubr.f32.mxu0 0.0
  %152 = vmatmul.mubr.f32.gmra.mrb[0].mxu0 %v50
  %v153 = vpop.f32.mrb[0].mxu0
  %v154 = vadd.f32 0.0, %v153
  %v155 = vpop.f32.mrb[0].mxu0
  %156 = vmatprep.mubr.f32.mxu0 0.0
  %157 = vmatmul.mubr.f32.gmra.mrb[0].mxu0 %v53
  %v158 = vpop.f32.mrb[0].mxu0
  %v159 = vadd.f32 0.0, %v158
  %v160 = vpop.f32.mrb[0].mxu0
  %161 = vmatprep.mubr.f32.mxu0 0.0
  %162 = vmatmul.mubr.f32.gmra.mrb[0].mxu0 %v56
  %v163 = vpop.f32.mrb[0].mxu0
  %v164 = vadd.f32 0.0, %v163
  %v165 = vpop.f32.mrb[0].mxu0
  %166 = vdwg.mxu0
  %v167 = vmul.f32 %v129, %v129
  %v168 = vmul.f32 %v134, %v134
  %v169 = vmul.f32 %v139, %v139
  %v170 = vmul.f32 %v144, %v144
  %v171 = vmul.f32 %v149, %v149
  %v172 = vmul.f32 %v154, %v154
  %v173 = vmul.f32 %v159, %v159
  %v174 = vmul.f32 %v164, %v164
  %v175 = vld [vmem:[%s2] sm:$0xff]
  %vm176 = vcmask 523264
  %v178 = vsel %vm176, %v175, 0
  %180 = vmatprep.subr.mxu0 0.0
  %181 = vmatpush1.msra.mxu0 %v167
  %182 = vmatprep.subr.mxu0 0.0
  %183 = vmatpush1.msra.mxu0 %v168
  %184 = vmatprep.subr.mxu0 0.0
  %185 = vmatpush1.msra.mxu0 %v169
  %186 = vmatprep.subr.mxu0 0.0
  %187 = vmatpush1.msra.mxu0 %v170
  %188 = vmatprep.subr.mxu0 0.0
  %189 = vmatpush1.msra.mxu0 %v171
  %190 = vmatprep.subr.mxu0 0.0
  %191 = vmatpush1.msra.mxu0 %v172
  %192 = vmatprep.subr.mxu0 0.0
  %193 = vmatpush1.msra.mxu0 %v173
  %194 = vmatprep.subr.mxu0 0.0
  %195 = vmatpush1.msra.mxu0 %v174
  %196 = vmatprep.subr.mxu0 0.0
  %197 = vmatpush1.msra.mxu0 0.0
  %198 = vmatprep.subr.mxu0 0.0
  %199 = vmatpush1.msra.mxu0 0.0
  %200 = vmatprep.subr.mxu0 0.0
  %201 = vmatpush1.msra.mxu0 0.0
  %202 = vmatprep.subr.mxu0 0.0
  %203 = vmatpush1.msra.mxu0 0.0
  %204 = vmatprep.subr.mxu0 0.0
  %205 = vmatpush1.msra.mxu0 0.0
  %206 = vmatprep.subr.mxu0 0.0
  %207 = vmatpush1.msra.mxu0 0.0
  %208 = vmatprep.subr.mxu0 0.0
  %209 = vmatpush1.msra.mxu0 0.0
  %210 = vmatprep.subr.mxu0 0.0
  %211 = vmatpush1.msra.mxu0 0.0
  %212 = vmatprep.subr.mxu0 0.0
  %213 = vmatpush1.msra.mxu0 0.0
  %214 = vmatprep.subr.mxu0 0.0
  %215 = vmatpush1.msra.mxu0 0.0
  %216 = vmatprep.subr.mxu0 0.0
  %217 = vmatpush1.msra.mxu0 0.0
  %218 = vmatprep.subr.mxu0 0.0
  %219 = vmatpush1.msra.mxu0 0.0
  %220 = vmatprep.subr.mxu0 0.0
  %221 = vmatpush1.msra.mxu0 0.0
  %222 = vmatprep.subr.mxu0 0.0
  %223 = vmatpush1.msra.mxu0 0.0
  %224 = vmatprep.subr.mxu0 0.0
  %225 = vmatpush1.msra.mxu0 0.0
  %226 = vmatprep.subr.mxu0 0.0
  %227 = vmatpush1.msra.mxu0 0.0
  %228 = vmatprep.subr.mxu0 0.0
  %229 = vmatpush1.msra.mxu0 0.0
  %230 = vmatprep.subr.mxu0 0.0
  %231 = vmatpush1.msra.mxu0 0.0
  %232 = vmatprep.subr.mxu0 0.0
  %233 = vmatpush1.msra.mxu0 0.0
  %234 = vmatprep.subr.mxu0 0.0
  %235 = vmatpush1.msra.mxu0 0.0
  %236 = vmatprep.subr.mxu0 0.0
  %237 = vmatpush1.msra.mxu0 0.0
  %238 = vmatprep.subr.mxu0 0.0
  %239 = vmatpush1.msra.mxu0 0.0
  %240 = vmatprep.subr.mxu0 0.0
  %241 = vmatpush1.msra.mxu0 0.0
  %242 = vmatprep.subr.mxu0 0.0
  %243 = vmatpush1.msra.mxu0 0.0
  %244 = vmatprep.mubr.f32.mxu0 0.0
  %245 = vmatmul.mubr.f32.gmra.mrb[0].mxu0 %v178
  %v246 = vpop.f32.mrb[0].mxu0
  %v247 = vadd.f32 0.0, %v246
  %v248 = vpop.f32.mrb[0].mxu0
  %249 = vdwg.mxu0
  %v250 = vld [vmem:[%s3] sm:$0xff]
  %v251 = vld [vmem:[%s3 + $0x8] sm:$0xff]
  %v252 = vld [vmem:[%s3 + $0x10] sm:$0xff]
  %v253 = vld [vmem:[%s3 + $0x18] sm:$0xff]
  %vm254 = vcmask 261120
  %v256 = vsel %vm254, %v247, 0
  %258 = vmatprep.subr.mxu0 0.0
  %259 = vmatpush1.msra.mxu0 %v250
  %260 = vmatprep.subr.mxu0 0.0
  %261 = vmatpush1.msra.mxu0 %v251
  %262 = vmatprep.subr.mxu0 0.0
  %263 = vmatpush1.msra.mxu0 %v252
  %264 = vmatprep.subr.mxu0 0.0
  %265 = vmatpush1.msra.mxu0 %v253
  %266 = vmatprep.subr.mxu0 0.0
  %267 = vmatpush1.msra.mxu0 0.0
  %268 = vmatprep.subr.mxu0 0.0
  %269 = vmatpush1.msra.mxu0 0.0
  %270 = vmatprep.subr.mxu0 0.0
  %271 = vmatpush1.msra.mxu0 0.0
  %272 = vmatprep.subr.mxu0 0.0
  %273 = vmatpush1.msra.mxu0 0.0
  %274 = vmatprep.subr.mxu0 0.0
  %275 = vmatpush1.msra.mxu0 0.0
  %276 = vmatprep.subr.mxu0 0.0
  %277 = vmatpush1.msra.mxu0 0.0
  %278 = vmatprep.subr.mxu0 0.0
  %279 = vmatpush1.msra.mxu0 0.0
  %280 = vmatprep.subr.mxu0 0.0
  %281 = vmatpush1.msra.mxu0 0.0
  %282 = vmatprep.subr.mxu0 0.0
  %283 = vmatpush1.msra.mxu0 0.0
  %284 = vmatprep.subr.mxu0 0.0
  %285 = vmatpush1.msra.mxu0 0.0
  %286 = vmatprep.subr.mxu0 0.0
  %287 = vmatpush1.msra.mxu0 0.0
  %288 = vmatprep.subr.mxu0 0.0
  %289 = vmatpush1.msra.mxu0 0.0
  %290 = vmatprep.subr.mxu0 0.0
  %291 = vmatpush1.msra.mxu0 0.0
  %292 = vmatprep.subr.mxu0 0.0
  %293 = vmatpush1.msra.mxu0 0.0
  %294 = vmatprep.subr.mxu0 0.0
  %295 = vmatpush1.msra.mxu0 0.0
  %296 = vmatprep.subr.mxu0 0.0
  %297 = vmatpush1.msra.mxu0 0.0
  %298 = vmatprep.subr.mxu0 0.0
  %299 = vmatpush1.msra.mxu0 0.0
  %300 = vmatprep.subr.mxu0 0.0
  %301 = vmatpush1.msra.mxu0 0.0
  %302 = vmatprep.subr.mxu0 0.0
  %303 = vmatpush1.msra.mxu0 0.0
  %304 = vmatprep.subr.mxu0 0.0
  %305 = vmatpush1.msra.mxu0 0.0
  %306 = vmatprep.subr.mxu0 0.0
  %307 = vmatpush1.msra.mxu0 0.0
  %308 = vmatprep.subr.mxu0 0.0
  %309 = vmatpush1.msra.mxu0 0.0
  %310 = vmatprep.subr.mxu0 0.0
  %311 = vmatpush1.msra.mxu0 0.0
  %312 = vmatprep.subr.mxu0 0.0
  %313 = vmatpush1.msra.mxu0 0.0
  %314 = vmatprep.subr.mxu0 0.0
  %315 = vmatpush1.msra.mxu0 0.0
  %316 = vmatprep.subr.mxu0 0.0
  %317 = vmatpush1.msra.mxu0 0.0
  %318 = vmatprep.subr.mxu0 0.0
  %319 = vmatpush1.msra.mxu0 0.0
  %320 = vmatprep.subr.mxu0 0.0
  %321 = vmatpush1.msra.mxu0 0.0
  %322 = vmatprep.mubr.f32.mxu0 0.0
  %323 = vmatmul.mubr.f32.gmra.mrb[0].mxu0 %v256
  %v324 = vpop.f32.mrb[0].mxu0
  %v325 = vadd.f32 0.0, %v324
  %v326 = vpop.f32.mrb[0].mxu0
  %327 = vdwg.mxu0
  %v328 = vld [vmem:[%s4] sm:$0xff]
  %v329 = vld [vmem:[%s4 + $0x8] sm:$0xff]
  %v330 = vld [vmem:[%s4 + $0x10] sm:$0xff]
  %v331 = vld [vmem:[%s4 + $0x18] sm:$0xff]
  %v332 = vld [vmem:[%s4 + $0x20] sm:$0xff]
  %v333 = vld [vmem:[%s4 + $0x28] sm:$0xff]
  %v334 = vld [vmem:[%s4 + $0x30] sm:$0xff]
  %v335 = vld [vmem:[%s4 + $0x38] sm:$0xff]
  %vm336 = vcmask 64512
  %v338 = vsel %vm336, %v328, 0
  %v341 = vsel %vm336, %v329, 0
  %v344 = vsel %vm336, %v330, 0
  %v347 = vsel %vm336, %v331, 0
  %v350 = vsel %vm336, %v332, 0
  %v353 = vsel %vm336, %v333, 0
  %v356 = vsel %vm336, %v334, 0
  %v359 = vsel %vm336, %v335, 0
  %361 = vmatprep.subr.mxu0 0.0
  %362 = vmatpush1.msra.mxu0 %v325
  %363 = vmatprep.subr.mxu0 0.0
  %364 = vmatpush1.msra.mxu0 0.0
  %365 = vmatprep.subr.mxu0 0.0
  %366 = vmatpush1.msra.mxu0 0.0
  %367 = vmatprep.subr.mxu0 0.0
  %368 = vmatpush1.msra.mxu0 0.0
  %369 = vmatprep.subr.mxu0 0.0
  %370 = vmatpush1.msra.mxu0 0.0
  %371 = vmatprep.subr.mxu0 0.0
  %372 = vmatpush1.msra.mxu0 0.0
  %373 = vmatprep.subr.mxu0 0.0
  %374 = vmatpush1.msra.mxu0 0.0
  %375 = vmatprep.subr.mxu0 0.0
  %376 = vmatpush1.msra.mxu0 0.0
  %377 = vmatprep.subr.mxu0 0.0
  %378 = vmatpush1.msra.mxu0 0.0
  %379 = vmatprep.subr.mxu0 0.0
  %380 = vmatpush1.msra.mxu0 0.0
  %381 = vmatprep.subr.mxu0 0.0
  %382 = vmatpush1.msra.mxu0 0.0
  %383 = vmatprep.subr.mxu0 0.0
  %384 = vmatpush1.msra.mxu0 0.0
  %385 = vmatprep.subr.mxu0 0.0
  %386 = vmatpush1.msra.mxu0 0.0
  %387 = vmatprep.subr.mxu0 0.0
  %388 = vmatpush1.msra.mxu0 0.0
  %389 = vmatprep.subr.mxu0 0.0
  %390 = vmatpush1.msra.mxu0 0.0
  %391 = vmatprep.subr.mxu0 0.0
  %392 = vmatpush1.msra.mxu0 0.0
  %393 = vmatprep.subr.mxu0 0.0
  %394 = vmatpush1.msra.mxu0 0.0
  %395 = vmatprep.subr.mxu0 0.0
  %396 = vmatpush1.msra.mxu0 0.0
  %397 = vmatprep.subr.mxu0 0.0
  %398 = vmatpush1.msra.mxu0 0.0
  %399 = vmatprep.subr.mxu0 0.0
  %400 = vmatpush1.msra.mxu0 0.0
  %401 = vmatprep.subr.mxu0 0.0
  %402 = vmatpush1.msra.mxu0 0.0
  %403 = vmatprep.subr.mxu0 0.0
  %404 = vmatpush1.msra.mxu0 0.0
  %405 = vmatprep.subr.mxu0 0.0
  %406 = vmatpush1.msra.mxu0 0.0
  %407 = vmatprep.subr.mxu0 0.0
  %408 = vmatpush1.msra.mxu0 0.0
  %409 = vmatprep.subr.mxu0 0.0
  %410 = vmatpush1.msra.mxu0 0.0
  %411 = vmatprep.subr.mxu0 0.0
  %412 = vmatpush1.msra.mxu0 0.0
  %413 = vmatprep.subr.mxu0 0.0
  %414 = vmatpush1.msra.mxu0 0.0
  %415 = vmatprep.subr.mxu0 0.0
  %416 = vmatpush1.msra.mxu0 0.0
  %417 = vmatprep.subr.mxu0 0.0
  %418 = vmatpush1.msra.mxu0 0.0
  %419 = vmatprep.subr.mxu0 0.0
  %420 = vmatpush1.msra.mxu0 0.0
  %421 = vmatprep.subr.mxu0 0.0
  %422 = vmatpush1.msra.mxu0 0.0
  %423 = vmatprep.subr.mxu0 0.0
  %424 = vmatpush1.msra.mxu0 0.0
  %425 = vmatprep.mubr.f32.mxu0 0.0
  %426 = vmatmul.mubr.f32.gmra.mrb[0].mxu0 %v338
  %v427 = vpop.f32.mrb[0].mxu0
  %v428 = vadd.f32 0.0, %v427
  %v429 = vpop.f32.mrb[0].mxu0
  %430 = vmatprep.mubr.f32.mxu0 0.0
  %431 = vmatmul.mubr.f32.gmra.mrb[0].mxu0 %v341
  %v432 = vpop.f32.mrb[0].mxu0
  %v433 = vadd.f32 0.0, %v432
  %v434 = vpop.f32.mrb[0].mxu0
  %435 = vmatprep.mubr.f32.mxu0 0.0
  %436 = vmatmul.mubr.f32.gmra.mrb[0].mxu0 %v344
  %v437 = vpop.f32.mrb[0].mxu0
  %v438 = vadd.f32 0.0, %v437
  %v439 = vpop.f32.mrb[0].mxu0
  %440 = vmatprep.mubr.f32.mxu0 0.0
  %441 = vmatmul.mubr.f32.gmra.mrb[0].mxu0 %v347
  %v442 = vpop.f32.mrb[0].mxu0
  %v443 = vadd.f32 0.0, %v442
  %v444 = vpop.f32.mrb[0].mxu0
  %445 = vmatprep.mubr.f32.mxu0 0.0
  %446 = vmatmul.mubr.f32.gmra.mrb[0].mxu0 %v350
  %v447 = vpop.f32.mrb[0].mxu0
  %v448 = vadd.f32 0.0, %v447
  %v449 = vpop.f32.mrb[0].mxu0
  %450 = vmatprep.mubr.f32.mxu0 0.0
  %451 = vmatmul.mubr.f32.gmra.mrb[0].mxu0 %v353
  %v452 = vpop.f32.mrb[0].mxu0
  %v453 = vadd.f32 0.0, %v452
  %v454 = vpop.f32.mrb[0].mxu0
  %455 = vmatprep.mubr.f32.mxu0 0.0
  %456 = vmatmul.mubr.f32.gmra.mrb[0].mxu0 %v356
  %v457 = vpop.f32.mrb[0].mxu0
  %v458 = vadd.f32 0.0, %v457
  %v459 = vpop.f32.mrb[0].mxu0
  %460 = vmatprep.mubr.f32.mxu0 0.0
  %461 = vmatmul.mubr.f32.gmra.mrb[0].mxu0 %v359
  %v462 = vpop.f32.mrb[0].mxu0
  %v463 = vadd.f32 0.0, %v462
  %v464 = vpop.f32.mrb[0].mxu0
  %465 = vdwg.mxu0
  %v466 = vadd.f32 %v428, 1e-12
  %v467 = vadd.f32 %v433, 1e-12
  %v468 = vadd.f32 %v438, 1e-12
  %v469 = vadd.f32 %v443, 1e-12
  %v470 = vadd.f32 %v448, 1e-12
  %v471 = vadd.f32 %v453, 1e-12
  %v472 = vadd.f32 %v458, 1e-12
  %v473 = vadd.f32 %v463, 1e-12
  %v474 = vrsqrt.pop %v466
  %v475 = vmul.f32 %v466, %v474
  %vm476 = vcmp.eq.f32.partialorder %v466, inf
  %v477 = vsel %vm476, %v466, %v475
  %vm478 = vcmp.eq.f32.partialorder %v466, 0.0
  %v479 = vand.u32 %v466, 2147483648
  %v480 = vsel %vm478, %v479, %v477
  %v481 = vrsqrt.pop %v467
  %v482 = vmul.f32 %v467, %v481
  %vm483 = vcmp.eq.f32.partialorder %v467, inf
  %v484 = vsel %vm483, %v467, %v482
  %vm485 = vcmp.eq.f32.partialorder %v467, 0.0
  %v486 = vand.u32 %v467, 2147483648
  %v487 = vsel %vm485, %v486, %v484
  %v488 = vrsqrt.pop %v468
  %v489 = vmul.f32 %v468, %v488
  %vm490 = vcmp.eq.f32.partialorder %v468, inf
  %v491 = vsel %vm490, %v468, %v489
  %vm492 = vcmp.eq.f32.partialorder %v468, 0.0
  %v493 = vand.u32 %v468, 2147483648
  %v494 = vsel %vm492, %v493, %v491
  %v495 = vrsqrt.pop %v469
  %v496 = vmul.f32 %v469, %v495
  %vm497 = vcmp.eq.f32.partialorder %v469, inf
  %v498 = vsel %vm497, %v469, %v496
  %vm499 = vcmp.eq.f32.partialorder %v469, 0.0
  %v500 = vand.u32 %v469, 2147483648
  %v501 = vsel %vm499, %v500, %v498
  %v502 = vrsqrt.pop %v470
  %v503 = vmul.f32 %v470, %v502
  %vm504 = vcmp.eq.f32.partialorder %v470, inf
  %v505 = vsel %vm504, %v470, %v503
  %vm506 = vcmp.eq.f32.partialorder %v470, 0.0
  %v507 = vand.u32 %v470, 2147483648
  %v508 = vsel %vm506, %v507, %v505
  %v509 = vrsqrt.pop %v471
  %v510 = vmul.f32 %v471, %v509
  %vm511 = vcmp.eq.f32.partialorder %v471, inf
  %v512 = vsel %vm511, %v471, %v510
  %vm513 = vcmp.eq.f32.partialorder %v471, 0.0
  %v514 = vand.u32 %v471, 2147483648
  %v515 = vsel %vm513, %v514, %v512
  %v516 = vrsqrt.pop %v472
  %v517 = vmul.f32 %v472, %v516
  %vm518 = vcmp.eq.f32.partialorder %v472, inf
  %v519 = vsel %vm518, %v472, %v517
  %vm520 = vcmp.eq.f32.partialorder %v472, 0.0
  %v521 = vand.u32 %v472, 2147483648
  %v522 = vsel %vm520, %v521, %v519
  %v523 = vrsqrt.pop %v473
  %v524 = vmul.f32 %v473, %v523
  %vm525 = vcmp.eq.f32.partialorder %v473, inf
  %v526 = vsel %vm525, %v473, %v524
  %vm527 = vcmp.eq.f32.partialorder %v473, 0.0
  %v528 = vand.u32 %v473, 2147483648
  %v529 = vsel %vm527, %v528, %v526
  %v530 = vadd.f32 %v428, 1.0
  %v531 = vadd.f32 %v433, 1.0
  %v532 = vadd.f32 %v438, 1.0
  %v533 = vadd.f32 %v443, 1.0
  %v534 = vadd.f32 %v448, 1.0
  %v535 = vadd.f32 %v453, 1.0
  %v536 = vadd.f32 %v458, 1.0
  %v537 = vadd.f32 %v463, 1.0
  %v538 = vrcp.pop %v530
  %v539 = vmul.f32 %v480, %v538
  %v540 = vrcp.pop %v531
  %v541 = vmul.f32 %v487, %v540
  %v542 = vrcp.pop %v532
  %v543 = vmul.f32 %v494, %v542
  %v544 = vrcp.pop %v533
  %v545 = vmul.f32 %v501, %v544
  %v546 = vrcp.pop %v534
  %v547 = vmul.f32 %v508, %v546
  %v548 = vrcp.pop %v535
  %v549 = vmul.f32 %v515, %v548
  %v550 = vrcp.pop %v536
  %v551 = vmul.f32 %v522, %v550
  %v552 = vrcp.pop %v537
  %v553 = vmul.f32 %v529, %v552
  %v554 = vld [vmem:[%s5] sm:$0x3]
  %vm555 = vcmask 15360
  %v557 = vsel %vm555, %v539, 0
  %v560 = vsel %vm555, %v541, 0
  %v563 = vsel %vm555, %v543, 0
  %v566 = vsel %vm555, %v545, 0
  %v569 = vsel %vm555, %v547, 0
  %v572 = vsel %vm555, %v549, 0
  %v575 = vsel %vm555, %v551, 0
  %v578 = vsel %vm555, %v553, 0
  %vm580 = vcmask 1041408
  %v582 = vsel %vm580, %v554, 0
  %584 = vmatprep.subr.mxu0 0.0
  %585 = vmatpush1.msra.mxu0 %v582
  %586 = vmatprep.subr.mxu0 0.0
  %587 = vmatpush1.msra.mxu0 0.0
  %588 = vmatprep.subr.mxu0 0.0
  %589 = vmatpush1.msra.mxu0 0.0
  %590 = vmatprep.subr.mxu0 0.0
  %591 = vmatpush1.msra.mxu0 0.0
  %592 = vmatprep.subr.mxu0 0.0
  %593 = vmatpush1.msra.mxu0 0.0
  %594 = vmatprep.subr.mxu0 0.0
  %595 = vmatpush1.msra.mxu0 0.0
  %596 = vmatprep.subr.mxu0 0.0
  %597 = vmatpush1.msra.mxu0 0.0
  %598 = vmatprep.subr.mxu0 0.0
  %599 = vmatpush1.msra.mxu0 0.0
  %600 = vmatprep.subr.mxu0 0.0
  %601 = vmatpush1.msra.mxu0 0.0
  %602 = vmatprep.subr.mxu0 0.0
  %603 = vmatpush1.msra.mxu0 0.0
  %604 = vmatprep.subr.mxu0 0.0
  %605 = vmatpush1.msra.mxu0 0.0
  %606 = vmatprep.subr.mxu0 0.0
  %607 = vmatpush1.msra.mxu0 0.0
  %608 = vmatprep.subr.mxu0 0.0
  %609 = vmatpush1.msra.mxu0 0.0
  %610 = vmatprep.subr.mxu0 0.0
  %611 = vmatpush1.msra.mxu0 0.0
  %612 = vmatprep.subr.mxu0 0.0
  %613 = vmatpush1.msra.mxu0 0.0
  %614 = vmatprep.subr.mxu0 0.0
  %615 = vmatpush1.msra.mxu0 0.0
  %616 = vmatprep.subr.mxu0 0.0
  %617 = vmatpush1.msra.mxu0 0.0
  %618 = vmatprep.subr.mxu0 0.0
  %619 = vmatpush1.msra.mxu0 0.0
  %620 = vmatprep.subr.mxu0 0.0
  %621 = vmatpush1.msra.mxu0 0.0
  %622 = vmatprep.subr.mxu0 0.0
  %623 = vmatpush1.msra.mxu0 0.0
  %624 = vmatprep.subr.mxu0 0.0
  %625 = vmatpush1.msra.mxu0 0.0
  %626 = vmatprep.subr.mxu0 0.0
  %627 = vmatpush1.msra.mxu0 0.0
  %628 = vmatprep.subr.mxu0 0.0
  %629 = vmatpush1.msra.mxu0 0.0
  %630 = vmatprep.subr.mxu0 0.0
  %631 = vmatpush1.msra.mxu0 0.0
  %632 = vmatprep.subr.mxu0 0.0
  %633 = vmatpush1.msra.mxu0 0.0
  %634 = vmatprep.subr.mxu0 0.0
  %635 = vmatpush1.msra.mxu0 0.0
  %636 = vmatprep.subr.mxu0 0.0
  %637 = vmatpush1.msra.mxu0 0.0
  %638 = vmatprep.subr.mxu0 0.0
  %639 = vmatpush1.msra.mxu0 0.0
  %640 = vmatprep.subr.mxu0 0.0
  %641 = vmatpush1.msra.mxu0 0.0
  %642 = vmatprep.subr.mxu0 0.0
  %643 = vmatpush1.msra.mxu0 0.0
  %644 = vmatprep.subr.mxu0 0.0
  %645 = vmatpush1.msra.mxu0 0.0
  %646 = vmatprep.subr.mxu0 0.0
  %647 = vmatpush1.msra.mxu0 0.0
  %648 = vmatprep.mubr.f32.mxu0 0.0
  %649 = vmatmul.mubr.f32.gmra.mrb[0].mxu0 %v557
  %v650 = vpop.f32.mrb[0].mxu0
  %v651 = vadd.f32 0.0, %v650
  %v652 = vpop.f32.mrb[0].mxu0
  %653 = vmatprep.mubr.f32.mxu0 0.0
  %654 = vmatmul.mubr.f32.gmra.mrb[0].mxu0 %v560
  %v655 = vpop.f32.mrb[0].mxu0
  %v656 = vadd.f32 0.0, %v655
  %v657 = vpop.f32.mrb[0].mxu0
  %658 = vmatprep.mubr.f32.mxu0 0.0
  %659 = vmatmul.mubr.f32.gmra.mrb[0].mxu0 %v563
  %v660 = vpop.f32.mrb[0].mxu0
  %v661 = vadd.f32 0.0, %v660
  %v662 = vpop.f32.mrb[0].mxu0
  %663 = vmatprep.mubr.f32.mxu0 0.0
  %664 = vmatmul.mubr.f32.gmra.mrb[0].mxu0 %v566
  %v665 = vpop.f32.mrb[0].mxu0
  %v666 = vadd.f32 0.0, %v665
  %v667 = vpop.f32.mrb[0].mxu0
  %668 = vmatprep.mubr.f32.mxu0 0.0
  %669 = vmatmul.mubr.f32.gmra.mrb[0].mxu0 %v569
  %v670 = vpop.f32.mrb[0].mxu0
  %v671 = vadd.f32 0.0, %v670
  %v672 = vpop.f32.mrb[0].mxu0
  %673 = vmatprep.mubr.f32.mxu0 0.0
  %674 = vmatmul.mubr.f32.gmra.mrb[0].mxu0 %v572
  %v675 = vpop.f32.mrb[0].mxu0
  %v676 = vadd.f32 0.0, %v675
  %v677 = vpop.f32.mrb[0].mxu0
  %678 = vmatprep.mubr.f32.mxu0 0.0
  %679 = vmatmul.mubr.f32.gmra.mrb[0].mxu0 %v575
  %v680 = vpop.f32.mrb[0].mxu0
  %v681 = vadd.f32 0.0, %v680
  %v682 = vpop.f32.mrb[0].mxu0
  %683 = vmatprep.mubr.f32.mxu0 0.0
  %684 = vmatmul.mubr.f32.gmra.mrb[0].mxu0 %v578
  %v685 = vpop.f32.mrb[0].mxu0
  %v686 = vadd.f32 0.0, %v685
  %v687 = vpop.f32.mrb[0].mxu0
  %688 = vdwg.mxu0
  %v689 = vmul.f32 %v129, %v651
  %v690 = vmul.f32 %v134, %v656
  %v691 = vmul.f32 %v139, %v661
  %v692 = vmul.f32 %v144, %v666
  %v693 = vmul.f32 %v149, %v671
  %v694 = vmul.f32 %v154, %v676
  %v695 = vmul.f32 %v159, %v681
  %v696 = vmul.f32 %v164, %v686
  %697 = vst.msk [vmem:[%s6] sm:$0xff] %vm254, %v689
  %698 = vst.msk [vmem:[%s6 + $0x8] sm:$0xff] %vm254, %v690
  %699 = vst.msk [vmem:[%s6 + $0x10] sm:$0xff] %vm254, %v691
  %700 = vst.msk [vmem:[%s6 + $0x18] sm:$0xff] %vm254, %v692
  %701 = vst.msk [vmem:[%s6 + $0x20] sm:$0xff] %vm254, %v693
  %702 = vst.msk [vmem:[%s6 + $0x28] sm:$0xff] %vm254, %v694
  %703 = vst.msk [vmem:[%s6 + $0x30] sm:$0xff] %vm254, %v695
  %704 = vst.msk [vmem:[%s6 + $0x38] sm:$0xff] %vm254, %v696
  // Predicated region
  $region26: #{tpu_custom_call.1} parent=0 // pred_check
    _
  $region27: #{tpu_custom_call.1} parent=0 // pred_check_branch
    %706 = sbr.rel (0) target = $region29
  $region28: #{tpu_custom_call.1} parent=0 // pred_region
    _
  $region29: #{tpu_custom_call.1} parent=0 // pred_fallthru
    _
  // Predicated region
  $region30: #{tpu_custom_call.1} parent=0 // pred_check
    _
  $region31: #{tpu_custom_call.1} parent=0 // pred_check_branch
    %708 = sbr.rel (0) target = $region33
  $region32: #{tpu_custom_call.1} parent=0 // pred_region
    _
  $region33: #{tpu_custom_call.1} parent=0 // pred_fallthru
    _

</llo_original>
